<compile_context>
chip_gen: v6e
topology: v6e:2x2x1
jax: 0.10.0
libtpu: 0.0.40
codegen_flags: <defaults>
</compile_context>

<pallas_src>
import math

import jax
import jax.numpy as jnp
from jax.experimental import pallas as pl
from jax.experimental.pallas import tpu as pltpu


_LANE = 128   # lane width: I-tile must be a multiple of this (or the full I)
_MXU = 256    # M-tile alignment: keeps v6e/v7x 256x256 MXU full (2 passes on v5e)


def _round_up(x, m):
    return ((x + m - 1) // m) * m


def _bert_intermediate_kernel(x_ref, w_ref, b_ref, o_ref):
    # y = gelu(x @ W + b), gelu(x) = x * 0.5 * (1 + erf(x / sqrt(2)))
    # bf16 operands on the MXU, f32 accumulation / activation, cast on store.
    y = jnp.dot(x_ref[...], w_ref[...], preferred_element_type=jnp.float32)
    y = y + b_ref[...].astype(jnp.float32)
    y = y * 0.5 * (1.0 + jax.lax.erf(y * (1.0 / math.sqrt(2.0))))
    o_ref[...] = y.astype(o_ref.dtype)


def bert_intermediate(hidden_states, weight, bias, *, tm=512,
                      compute_dtype=jnp.bfloat16, out_dtype=None):
    """hidden_states: (B, S, H); weight: (H, I) [= PyTorch weight.T]; bias: (I,)."""
    B, S, H = hidden_states.shape
    I = weight.shape[1]
    M = B * S
    out_dtype = hidden_states.dtype if out_dtype is None else out_dtype

    # Cast matmul operands once here (bf16 MXU path); bias stays f32.
    x2d = hidden_states.reshape(M, H).astype(compute_dtype)
    w = weight.astype(compute_dtype)
    b2d = bias.reshape(1, I).astype(jnp.float32)

    x_bytes = jnp.dtype(compute_dtype).itemsize
    w_bytes = x_bytes
    out_bytes = jnp.dtype(out_dtype).itemsize

    # --- M tiling: align to the MXU dim; pad tiny M up rather than shrink. ---
    TM = min(_round_up(tm, _MXU), _round_up(M, _MXU))
    M_pad = _round_up(M, TM)
    if M_pad != M:
        x2d = jnp.pad(x2d, ((0, M_pad - M), (0, 0)))
    grid_m = M_pad // TM

    # --- Generation-aware VMEM budget. ---------------------------------------
    try:
        phys_vmem = int(pltpu.get_tpu_info().vmem_capacity_bytes)
    except Exception:
        phys_vmem = 64 << 20                      # v7x per-core size: safe floor
    vmem_cap = int(phys_vmem * 0.8)               # leave Mosaic scratch headroom

    def _footprint(ti, w_bufs):
        return (2 * TM * H * x_bytes              # double-buffered x tiles
                + 2 * TM * ti * out_bytes         # double-buffered out tiles
                + w_bufs * H * ti * w_bytes       # resident weight slice
                + w_bufs * ti * 4                 # resident bias (f32)
                + 2 * TM * ti * 4)                # f32 accum / GELU intermediate

    # Split I (outer "parallel" axis) only if the resident weight + tiles would
    # not fit; sized with a double-buffered weight so the non-Buffered fallback
    # below also fits.  Each weight slice is still DMA'd from HBM exactly once.
    TI = I
    if I % _LANE == 0:
        for ti in [I // s for s in range(1, I // _LANE + 1)
                   if I % s == 0 and (I // s) % _LANE == 0]:
            TI = ti
            if _footprint(ti, 2) <= vmem_cap:
                break
    grid_i = I // TI

    vmem_limit = int(min(max(int(1.25 * _footprint(TI, 2)), 32 << 20), vmem_cap))

    cost = pl.CostEstimate(
        flops=2 * M_pad * H * I,
        transcendentals=M_pad * I,
        bytes_accessed=(grid_i * M_pad * H * x_bytes
                        + H * I * w_bytes
                        + I * 4
                        + M_pad * I * out_bytes),
    )

    def _call(single_buffer_resident):
        # Grid-invariant weight/bias blocks: one VMEM copy, not two.
        res_kwargs = (dict(pipeline_mode=pl.Buffered(1))
                      if single_buffer_resident else {})
        return pl.pallas_call(
            _bert_intermediate_kernel,
            out_shape=jax.ShapeDtypeStruct((M_pad, I), out_dtype),
            grid_spec=pltpu.PrefetchScalarGridSpec(
                num_scalar_prefetch=0,
                grid=(grid_i, grid_m),            # I outer, M inner (both parallel)
                in_specs=[
                    pl.BlockSpec((TM, H), lambda j, i: (i, 0)),             # x tile
                    pl.BlockSpec((H, TI), lambda j, i: (0, j), **res_kwargs),  # W slice
                    pl.BlockSpec((1, TI), lambda j, i: (0, j), **res_kwargs),  # bias
                ],
                out_specs=pl.BlockSpec((TM, TI), lambda j, i: (i, j)),
            ),
            compiler_params=pltpu.CompilerParams(
                dimension_semantics=("parallel", "parallel"),
                vmem_limit_bytes=vmem_limit,
            ),
            cost_estimate=cost,
        )(x2d, w, b2d)

    try:
        out = _call(True)
    except Exception:
        # Fallback for Pallas versions without BlockSpec pipeline_mode support.
        out = _call(False)

    if M_pad != M:
        out = out[:M]
    return out.reshape(B, S, I)


if __name__ == "__main__":
    # Small BERT-like config: hidden_size=32, intermediate_size=64
    batch, seq, hidden, intermediate = 2, 8, 32, 64

    key = jax.random.PRNGKey(0)
    k_x, k_w, k_b = jax.random.split(key, 3)

    x = jax.random.normal(k_x, (batch, seq, hidden), dtype=jnp.float32)
    # Deterministic synthetic parameters (nn.Linear(hidden, intermediate)):
    # weight stored as (H, I), i.e. transpose of PyTorch's (I, H) weight.
    weight = jax.random.normal(k_w, (hidden, intermediate), dtype=jnp.float32) * 0.02
    bias = jax.random.normal(k_b, (intermediate,), dtype=jnp.float32) * 0.02

    out = bert_intermediate(x, weight, bias)
    jax.block_until_ready(out)

    # Reference check in plain JAX (same math as the PyTorch module).
    ref = x.reshape(-1, hidden) @ weight + bias
    ref = ref * 0.5 * (1.0 + jax.lax.erf(ref / math.sqrt(2.0)))
    ref = ref.reshape(batch, seq, intermediate)
    assert out.shape == (batch, seq, intermediate)
    # bf16 MXU operands (f32 accumulation) => bf16-level tolerance vs f32 ref.
    assert jnp.allclose(out.astype(jnp.float32), ref, atol=2e-2, rtol=2e-2)

    print("KERNEL_OK")
</pallas_src>

<mosaic_0001>
module attributes {stable_mosaic.version = 11 : i64} {
  func.func @_bert_intermediate_kernel(%arg0: i32, %arg1: i32, %arg2: memref<256x32xbf16, #tpu.memory_space<vmem>>, %arg3: memref<32x64xbf16, #tpu.memory_space<vmem>>, %arg4: memref<1x64xf32, #tpu.memory_space<vmem>>, %arg5: memref<256x64xf32, #tpu.memory_space<vmem>>) attributes {dimension_semantics = [#tpu.dimension_semantics<parallel>, #tpu.dimension_semantics<parallel>], iteration_bounds = array<i64: 1, 1>, scalar_prefetch = 0 : i64, scratch_operands = 0 : i64, tpu.core_type = #tpu.core_type<tc>, window_params = [{transform_indices = @transform_0, window_bounds = array<i64: 256, 32>}, {pipeline_mode = #tpu.pipeline_mode<synchronous>, transform_indices = @transform_1, window_bounds = array<i64: 32, 64>}, {pipeline_mode = #tpu.pipeline_mode<synchronous>, transform_indices = @transform_2, window_bounds = array<i64: 1, 64>}, {transform_indices = @transform_3, window_bounds = array<i64: 256, 64>}]} {
    %c0 = arith.constant 0 : index
    %c0_0 = arith.constant 0 : index
    %0 = vector.load %arg2[%c0, %c0_0] : memref<256x32xbf16, #tpu.memory_space<vmem>>, vector<256x32xbf16>
    %c0_1 = arith.constant 0 : index
    %c0_2 = arith.constant 0 : index
    %1 = vector.load %arg3[%c0_1, %c0_2] : memref<32x64xbf16, #tpu.memory_space<vmem>>, vector<32x64xbf16>
    %cst = arith.constant dense<0.000000e+00> : vector<256x64xf32>
    %2 = tpu.matmul %0, %1, %cst {dimension_numbers = #tpu.dot_dimension_numbers<[1], [0], [0], [1], [0, 0, 1, 1], [], []>} : vector<256x32xbf16>, vector<32x64xbf16>, vector<256x64xf32> -> vector<256x64xf32>
    %c0_3 = arith.constant 0 : index
    %c0_4 = arith.constant 0 : index
    %3 = vector.load %arg4[%c0_3, %c0_4] : memref<1x64xf32, #tpu.memory_space<vmem>>, vector<1x64xf32>
    %4 = vector.broadcast %3 : vector<1x64xf32> to vector<256x64xf32>
    %5 = arith.addf %2, %4 : vector<256x64xf32>
    %cst_5 = arith.constant 5.000000e-01 : f32
    %6 = vector.broadcast %cst_5 : f32 to vector<256x64xf32>
    %7 = arith.mulf %5, %6 : vector<256x64xf32>
    %cst_6 = arith.constant 0.707106769 : f32
    %8 = vector.broadcast %cst_6 : f32 to vector<256x64xf32>
    %9 = arith.mulf %5, %8 : vector<256x64xf32>
    %10 = math.erf %9 : vector<256x64xf32>
    %cst_7 = arith.constant 1.000000e+00 : f32
    %11 = vector.broadcast %cst_7 : f32 to vector<256x64xf32>
    %12 = arith.addf %11, %10 : vector<256x64xf32>
    %13 = arith.mulf %7, %12 : vector<256x64xf32>
    %c0_8 = arith.constant 0 : index
    %c0_9 = arith.constant 0 : index
    %14 = vector.load %arg5[%c0_8, %c0_9] : memref<256x64xf32, #tpu.memory_space<vmem>>, vector<256x64xf32>
    tpu.vector_store %arg5[%c0_8, %c0_9], %13 {strides = array<i32>} : memref<256x64xf32, #tpu.memory_space<vmem>>, vector<256x64xf32>,
    return
  }
  func.func @transform_0(%arg0: i32, %arg1: i32) -> (i32, i32) {
    %c0_i32 = arith.constant 0 : i32
    %c0_i32_0 = arith.constant 0 : i32
    return %arg1, %c0_i32 : i32, i32
  }
  func.func @transform_1(%arg0: i32, %arg1: i32) -> (i32, i32) {
    %c0_i32 = arith.constant 0 : i32
    %c0_i32_0 = arith.constant 0 : i32
    return %c0_i32, %arg0 : i32, i32
  }
  func.func @transform_2(%arg0: i32, %arg1: i32) -> (i32, i32) {
    %c0_i32 = arith.constant 0 : i32
    %c0_i32_0 = arith.constant 0 : i32
    return %c0_i32, %arg0 : i32, i32
  }
  func.func @transform_3(%arg0: i32, %arg1: i32) -> (i32, i32) {
    %c0_i32 = arith.constant 0 : i32
    return %arg1, %arg0 : i32, i32
  }
}

module attributes {stable_mosaic.version = 11 : i64} {
  func.func @_bert_intermediate_kernel(%arg0: i32, %arg1: i32, %arg2: memref<256x32xbf16, #tpu.memory_space<vmem>>, %arg3: memref<32x64xbf16, #tpu.memory_space<vmem>>, %arg4: memref<1x64xf32, #tpu.memory_space<vmem>>, %arg5: memref<256x64xf32, #tpu.memory_space<vmem>>) attributes {dimension_semantics = [#tpu.dimension_semantics<parallel>, #tpu.dimension_semantics<parallel>], iteration_bounds = array<i64: 1, 1>, scalar_prefetch = 0 : i64, scratch_operands = 0 : i64, tpu.core_type = #tpu.core_type<tc>, window_params = [{transform_indices = @transform_0, window_bounds = array<i64: 256, 32>}, {transform_indices = @transform_1, window_bounds = array<i64: 32, 64>}, {transform_indices = @transform_2, window_bounds = array<i64: 1, 64>}, {transform_indices = @transform_3, window_bounds = array<i64: 256, 64>}]} {
    %c0 = arith.constant 0 : index
    %c0_0 = arith.constant 0 : index
    %0 = vector.load %arg2[%c0, %c0_0] : memref<256x32xbf16, #tpu.memory_space<vmem>>, vector<256x32xbf16>
    %c0_1 = arith.constant 0 : index
    %c0_2 = arith.constant 0 : index
    %1 = vector.load %arg3[%c0_1, %c0_2] : memref<32x64xbf16, #tpu.memory_space<vmem>>, vector<32x64xbf16>
    %cst = arith.constant dense<0.000000e+00> : vector<256x64xf32>
    %2 = tpu.matmul %0, %1, %cst {dimension_numbers = #tpu.dot_dimension_numbers<[1], [0], [0], [1], [0, 0, 1, 1], [], []>} : vector<256x32xbf16>, vector<32x64xbf16>, vector<256x64xf32> -> vector<256x64xf32>
    %c0_3 = arith.constant 0 : index
    %c0_4 = arith.constant 0 : index
    %3 = vector.load %arg4[%c0_3, %c0_4] : memref<1x64xf32, #tpu.memory_space<vmem>>, vector<1x64xf32>
    %4 = vector.broadcast %3 : vector<1x64xf32> to vector<256x64xf32>
    %5 = arith.addf %2, %4 : vector<256x64xf32>
    %cst_5 = arith.constant 5.000000e-01 : f32
    %6 = vector.broadcast %cst_5 : f32 to vector<256x64xf32>
    %7 = arith.mulf %5, %6 : vector<256x64xf32>
    %cst_6 = arith.constant 0.707106769 : f32
    %8 = vector.broadcast %cst_6 : f32 to vector<256x64xf32>
    %9 = arith.mulf %5, %8 : vector<256x64xf32>
    %10 = math.erf %9 : vector<256x64xf32>
    %cst_7 = arith.constant 1.000000e+00 : f32
    %11 = vector.broadcast %cst_7 : f32 to vector<256x64xf32>
    %12 = arith.addf %11, %10 : vector<256x64xf32>
    %13 = arith.mulf %7, %12 : vector<256x64xf32>
    %c0_8 = arith.constant 0 : index
    %c0_9 = arith.constant 0 : index
    %14 = vector.load %arg5[%c0_8, %c0_9] : memref<256x64xf32, #tpu.memory_space<vmem>>, vector<256x64xf32>
    tpu.vector_store %arg5[%c0_8, %c0_9], %13 {strides = array<i32>} : memref<256x64xf32, #tpu.memory_space<vmem>>, vector<256x64xf32>,
    return
  }
  func.func @transform_0(%arg0: i32, %arg1: i32) -> (i32, i32) {
    %c0_i32 = arith.constant 0 : i32
    %c0_i32_0 = arith.constant 0 : i32
    return %arg1, %c0_i32 : i32, i32
  }
  func.func @transform_1(%arg0: i32, %arg1: i32) -> (i32, i32) {
    %c0_i32 = arith.constant 0 : i32
    %c0_i32_0 = arith.constant 0 : i32
    return %c0_i32, %arg0 : i32, i32
  }
  func.func @transform_2(%arg0: i32, %arg1: i32) -> (i32, i32) {
    %c0_i32 = arith.constant 0 : i32
    %c0_i32_0 = arith.constant 0 : i32
    return %c0_i32, %arg0 : i32, i32
  }
  func.func @transform_3(%arg0: i32, %arg1: i32) -> (i32, i32) {
    %c0_i32 = arith.constant 0 : i32
    return %arg1, %arg0 : i32, i32
  }
}

</mosaic_0001>

<llo_original>
// kernel: tpu_custom_call.1
$region0: #{tpu_custom_call.1}
  #allocation0 [shape = 'u32[]', space=smem, size = 0x4, offset = 0x4, fixed_abs, tag = 'smem constant byte address 0x4 - core index']
  #allocation1 [shape = 'u32[144,128]{1,0:T(1,128)}', space=vmem, size = 0x12000, scoped, tag = 'internal scratch']
  %s0 = inlined_call_operand.vmem [shape: bf16[256,32], index: 0, kind: input, shape index: {}]
  %s1 = inlined_call_operand.vmem [shape: bf16[32,64], index: 1, kind: input, shape index: {}]
  %s2 = inlined_call_operand.vmem [shape: f32[1,64], index: 2, kind: input, shape index: {}]
  %s3 = inlined_call_operand.vmem [shape: f32[256,64], index: 3, kind: output, shape index: {}]
  %s4 = sld [smem:[#allocation0]]
  $region22: #{tpu_custom_call.1} parent=0
    _
  %s6 = ssub.s32 1, %s4
  %s7 = scalar_select 0, %s6, %s4
  // Predicated region
  $region2: #{tpu_custom_call.1} parent=0 // pred_check
    _
  $region3: #{tpu_custom_call.1} parent=0 // pred_check_branch
    %9 = sbr.rel (0) target = $region5
  $region4: #{tpu_custom_call.1} parent=0 // pred_region
    _
  $region5: #{tpu_custom_call.1} parent=0 // pred_fallthru
    _
  // Predicated region
  $region6: #{tpu_custom_call.1} parent=0 // pred_check
    _
  $region7: #{tpu_custom_call.1} parent=0 // pred_check_branch
    %11 = sbr.rel (0) target = $region9
  $region8: #{tpu_custom_call.1} parent=0 // pred_region
    _
  $region9: #{tpu_custom_call.1} parent=0 // pred_fallthru
    _
  // Predicated region
  $region10: #{tpu_custom_call.1} parent=0 // pred_check
    _
  $region11: #{tpu_custom_call.1} parent=0 // pred_check_branch
    %13 = sbr.rel (0) target = $region13
  $region12: #{tpu_custom_call.1} parent=0 // pred_region
    _
  $region13: #{tpu_custom_call.1} parent=0 // pred_fallthru
    _
  %v15 = vld [vmem:[%s0] sm:$0xf]
  %v16 = vld [vmem:[%s0 + $0x4] sm:$0xf]
  %v17 = vld [vmem:[%s0 + $0x8] sm:$0xf]
  %v18 = vld [vmem:[%s0 + $0xc] sm:$0xf]
  %v19 = vld [vmem:[%s0 + $0x10] sm:$0xf]
  %v20 = vld [vmem:[%s0 + $0x14] sm:$0xf]
  %v21 = vld [vmem:[%s0 + $0x18] sm:$0xf]
  %v22 = vld [vmem:[%s0 + $0x1c] sm:$0xf]
  %v23 = vld [vmem:[%s0 + $0x20] sm:$0xf]
  %v24 = vld [vmem:[%s0 + $0x24] sm:$0xf]
  %v25 = vld [vmem:[%s0 + $0x28] sm:$0xf]
  %v26 = vld [vmem:[%s0 + $0x2c] sm:$0xf]
  %v27 = vld [vmem:[%s0 + $0x30] sm:$0xf]
  %v28 = vld [vmem:[%s0 + $0x34] sm:$0xf]
  %v29 = vld [vmem:[%s0 + $0x38] sm:$0xf]
  %v30 = vld [vmem:[%s0 + $0x3c] sm:$0xf]
  %v31 = vld [vmem:[%s0 + $0x40] sm:$0xf]
  %v32 = vld [vmem:[%s0 + $0x44] sm:$0xf]
  %v33 = vld [vmem:[%s0 + $0x48] sm:$0xf]
  %v34 = vld [vmem:[%s0 + $0x4c] sm:$0xf]
  %v35 = vld [vmem:[%s0 + $0x50] sm:$0xf]
  %v36 = vld [vmem:[%s0 + $0x54] sm:$0xf]
  %v37 = vld [vmem:[%s0 + $0x58] sm:$0xf]
  %v38 = vld [vmem:[%s0 + $0x5c] sm:$0xf]
  %v39 = vld [vmem:[%s0 + $0x60] sm:$0xf]
  %v40 = vld [vmem:[%s0 + $0x64] sm:$0xf]
  %v41 = vld [vmem:[%s0 + $0x68] sm:$0xf]
  %v42 = vld [vmem:[%s0 + $0x6c] sm:$0xf]
  %v43 = vld [vmem:[%s0 + $0x70] sm:$0xf]
  %v44 = vld [vmem:[%s0 + $0x74] sm:$0xf]
  %v45 = vld [vmem:[%s0 + $0x78] sm:$0xf]
  %v46 = vld [vmem:[%s0 + $0x7c] sm:$0xf]
  %v47 = vld [vmem:[%s1] sm:$0xf]
  %v48 = vld [vmem:[%s1 + $0x4] sm:$0xf]
  %v49 = vld [vmem:[%s1 + $0x8] sm:$0xf]
  %v50 = vld [vmem:[%s1 + $0xc] sm:$0xf]
  %v51 = vld [vmem:[%s2] sm:$0x1]
  %v53 = vlaneseq
  %v54 = vshrl.u32 %v53, 7
  %v55 = vsub.s32 0, %v54
  %v56 = vrot.slane %v51, %v55
  %v90 = vunpack.c.l.b16 %v15
  %v91 = vunpack.c.l.b16 %v16
  %v92 = vunpack.c.l.b16 %v17
  %v93 = vunpack.c.l.b16 %v18
  %v94 = vunpack.c.l.b16 %v19
  %v95 = vunpack.c.l.b16 %v20
  %v96 = vunpack.c.l.b16 %v21
  %v97 = vunpack.c.l.b16 %v22
  %v98 = vunpack.c.l.b16 %v23
  %v99 = vunpack.c.l.b16 %v24
  %v100 = vunpack.c.l.b16 %v25
  %v101 = vunpack.c.l.b16 %v26
  %v102 = vunpack.c.l.b16 %v27
  %v103 = vunpack.c.l.b16 %v28
  %v104 = vunpack.c.l.b16 %v29
  %v105 = vunpack.c.l.b16 %v30
  %v106 = vunpack.c.l.b16 %v31
  %v107 = vunpack.c.l.b16 %v32
  %v108 = vunpack.c.l.b16 %v33
  %v109 = vunpack.c.l.b16 %v34
  %v110 = vunpack.c.l.b16 %v35
  %v111 = vunpack.c.l.b16 %v36
  %v112 = vunpack.c.l.b16 %v37
  %v113 = vunpack.c.l.b16 %v38
  %v114 = vunpack.c.l.b16 %v39
  %v115 = vunpack.c.l.b16 %v40
  %v116 = vunpack.c.l.b16 %v41
  %v117 = vunpack.c.l.b16 %v42
  %v118 = vunpack.c.l.b16 %v43
  %v119 = vunpack.c.l.b16 %v44
  %v120 = vunpack.c.l.b16 %v45
  %v121 = vunpack.c.l.b16 %v46
  %v122 = vpack.c.b16 %v91, %v90
  %v123 = vpack.c.b16 %v93, %v92
  %v124 = vpack.c.b16 %v95, %v94
  %v125 = vpack.c.b16 %v97, %v96
  %v126 = vpack.c.b16 %v99, %v98
  %v127 = vpack.c.b16 %v101, %v100
  %v128 = vpack.c.b16 %v103, %v102
  %v129 = vpack.c.b16 %v105, %v104
  %v130 = vpack.c.b16 %v107, %v106
  %v131 = vpack.c.b16 %v109, %v108
  %v132 = vpack.c.b16 %v111, %v110
  %v133 = vpack.c.b16 %v113, %v112
  %v134 = vpack.c.b16 %v115, %v114
  %v135 = vpack.c.b16 %v117, %v116
  %v136 = vpack.c.b16 %v119, %v118
  %v137 = vpack.c.b16 %v121, %v120
  %v142 = vunpack.c.l.b16 %v47
  %v143 = vunpack.c.l.b16 %v48
  %v144 = vunpack.c.l.b16 %v49
  %v145 = vunpack.c.l.b16 %v50
  %v146 = vpack.c.b16 %v143, %v142
  %v147 = vpack.c.b16 %v145, %v144
  %vm150 = vcmask 261120
  %v152 = vsel %vm150, %v122, 0
  %v155 = vsel %vm150, %v123, 0
  %v158 = vsel %vm150, %v124, 0
  %v161 = vsel %vm150, %v125, 0
  %v164 = vsel %vm150, %v126, 0
  %v167 = vsel %vm150, %v127, 0
  %v170 = vsel %vm150, %v128, 0
  %v173 = vsel %vm150, %v129, 0
  %v176 = vsel %vm150, %v130, 0
  %v179 = vsel %vm150, %v131, 0
  %v182 = vsel %vm150, %v132, 0
  %v185 = vsel %vm150, %v133, 0
  %v188 = vsel %vm150, %v134, 0
  %v191 = vsel %vm150, %v135, 0
  %v194 = vsel %vm150, %v136, 0
  %v197 = vsel %vm150, %v137, 0
  %199 = vmatprep.subr.bf16.mxu0 0
  %200 = vmatpush1.bf16.msra.mxu0 0
  %201 = vmatprep.subr.bf16.mxu0 0
  %202 = vmatpush1.bf16.msra.mxu0 0
  %203 = vmatprep.subr.bf16.mxu0 0
  %204 = vmatpush1.bf16.msra.mxu0 0
  %205 = vmatprep.subr.bf16.mxu0 0
  %206 = vmatpush1.bf16.msra.mxu0 0
  %207 = vmatprep.subr.bf16.mxu0 0
  %208 = vmatpush1.bf16.msra.mxu0 0
  %209 = vmatprep.subr.bf16.mxu0 0
  %210 = vmatpush1.bf16.msra.mxu0 0
  %211 = vmatprep.subr.bf16.mxu0 0
  %212 = vmatpush1.bf16.msra.mxu0 %v147
  %213 = vmatprep.subr.bf16.mxu0 0
  %214 = vmatpush1.bf16.msra.mxu0 %v146
  %215 = vmatprep.subr.bf16.mxu0 0
  %216 = vmatpush2.bf16.msra.mxu0 0
  %217 = vmatprep.subr.bf16.mxu0 0
  %218 = vmatpush2.bf16.msra.mxu0 0
  %219 = vmatprep.subr.bf16.mxu0 0
  %220 = vmatpush2.bf16.msra.mxu0 0
  %221 = vmatprep.subr.bf16.mxu0 0
  %222 = vmatpush2.bf16.msra.mxu0 0
  %223 = vmatprep.subr.bf16.mxu0 0
  %224 = vmatpush2.bf16.msra.mxu0 0
  %225 = vmatprep.subr.bf16.mxu0 0
  %226 = vmatpush2.bf16.msra.mxu0 0
  %227 = vmatprep.subr.bf16.mxu0 0
  %228 = vmatpush2.bf16.msra.mxu0 0
  %229 = vmatprep.subr.bf16.mxu0 0
  %230 = vmatpush2.bf16.msra.mxu0 0
  %231 = vmatprep.mubr.bf16.mxu0 0
  %232 = vmatmul.mubr.bf16.gmra.mxu0 %v152
  %v233 = vpop.f32.mrf.mxu0
  %v234 = vadd.f32 %v56, %v233
  %v235 = vpop.f32.mrf.mxu0
  %v236 = vpop.f32.mrf.mxu0
  %v237 = vadd.f32 %v56, %v236
  %v238 = vpop.f32.mrf.mxu0
  %239 = vmatprep.mubr.bf16.mxu0 0
  %240 = vmatmul.mubr.bf16.gmra.mxu0 %v155
  %v241 = vpop.f32.mrf.mxu0
  %v242 = vadd.f32 %v56, %v241
  %v243 = vpop.f32.mrf.mxu0
  %v244 = vpop.f32.mrf.mxu0
  %v245 = vadd.f32 %v56, %v244
  %v246 = vpop.f32.mrf.mxu0
  %247 = vmatprep.mubr.bf16.mxu0 0
  %248 = vmatmul.mubr.bf16.gmra.mxu0 %v158
  %v249 = vpop.f32.mrf.mxu0
  %v250 = vadd.f32 %v56, %v249
  %v251 = vpop.f32.mrf.mxu0
  %v252 = vpop.f32.mrf.mxu0
  %v253 = vadd.f32 %v56, %v252
  %v254 = vpop.f32.mrf.mxu0
  %255 = vmatprep.mubr.bf16.mxu0 0
  %256 = vmatmul.mubr.bf16.gmra.mxu0 %v161
  %v257 = vpop.f32.mrf.mxu0
  %v258 = vadd.f32 %v56, %v257
  %v259 = vpop.f32.mrf.mxu0
  %v260 = vpop.f32.mrf.mxu0
  %v261 = vadd.f32 %v56, %v260
  %v262 = vpop.f32.mrf.mxu0
  %263 = vmatprep.mubr.bf16.mxu0 0
  %264 = vmatmul.mubr.bf16.gmra.mxu0 %v164
  %v265 = vpop.f32.mrf.mxu0
  %v266 = vadd.f32 %v56, %v265
  %v267 = vpop.f32.mrf.mxu0
  %v268 = vpop.f32.mrf.mxu0
  %v269 = vadd.f32 %v56, %v268
  %v270 = vpop.f32.mrf.mxu0
  %271 = vmatprep.mubr.bf16.mxu0 0
  %272 = vmatmul.mubr.bf16.gmra.mxu0 %v167
  %v273 = vpop.f32.mrf.mxu0
  %v274 = vadd.f32 %v56, %v273
  %v275 = vpop.f32.mrf.mxu0
  %v276 = vpop.f32.mrf.mxu0
  %v277 = vadd.f32 %v56, %v276
  %v278 = vpop.f32.mrf.mxu0
  %279 = vmatprep.mubr.bf16.mxu0 0
  %280 = vmatmul.mubr.bf16.gmra.mxu0 %v170
  %v281 = vpop.f32.mrf.mxu0
  %v282 = vadd.f32 %v56, %v281
  %v283 = vpop.f32.mrf.mxu0
  %v284 = vpop.f32.mrf.mxu0
  %v285 = vadd.f32 %v56, %v284
  %v286 = vpop.f32.mrf.mxu0
  %287 = vmatprep.mubr.bf16.mxu0 0
  %288 = vmatmul.mubr.bf16.gmra.mxu0 %v173
  %v289 = vpop.f32.mrf.mxu0
  %v290 = vadd.f32 %v56, %v289
  %v291 = vpop.f32.mrf.mxu0
  %v292 = vpop.f32.mrf.mxu0
  %v293 = vadd.f32 %v56, %v292
  %v294 = vpop.f32.mrf.mxu0
  %295 = vmatprep.mubr.bf16.mxu0 0
  %296 = vmatmul.mubr.bf16.gmra.mxu0 %v176
  %v297 = vpop.f32.mrf.mxu0
  %v298 = vadd.f32 %v56, %v297
  %v299 = vpop.f32.mrf.mxu0
  %v300 = vpop.f32.mrf.mxu0
  %v301 = vadd.f32 %v56, %v300
  %v302 = vpop.f32.mrf.mxu0
  %303 = vmatprep.mubr.bf16.mxu0 0
  %304 = vmatmul.mubr.bf16.gmra.mxu0 %v179
  %v305 = vpop.f32.mrf.mxu0
  %v306 = vadd.f32 %v56, %v305
  %v307 = vpop.f32.mrf.mxu0
  %v308 = vpop.f32.mrf.mxu0
  %v309 = vadd.f32 %v56, %v308
  %v310 = vpop.f32.mrf.mxu0
  %311 = vmatprep.mubr.bf16.mxu0 0
  %312 = vmatmul.mubr.bf16.gmra.mxu0 %v182
  %v313 = vpop.f32.mrf.mxu0
  %v314 = vadd.f32 %v56, %v313
  %v315 = vpop.f32.mrf.mxu0
  %v316 = vpop.f32.mrf.mxu0
  %v317 = vadd.f32 %v56, %v316
  %v318 = vpop.f32.mrf.mxu0
  %319 = vmatprep.mubr.bf16.mxu0 0
  %320 = vmatmul.mubr.bf16.gmra.mxu0 %v185
  %v321 = vpop.f32.mrf.mxu0
  %v322 = vadd.f32 %v56, %v321
  %v323 = vpop.f32.mrf.mxu0
  %v324 = vpop.f32.mrf.mxu0
  %v325 = vadd.f32 %v56, %v324
  %v326 = vpop.f32.mrf.mxu0
  %327 = vmatprep.mubr.bf16.mxu0 0
  %328 = vmatmul.mubr.bf16.gmra.mxu0 %v188
  %v329 = vpop.f32.mrf.mxu0
  %v330 = vadd.f32 %v56, %v329
  %v331 = vpop.f32.mrf.mxu0
  %v332 = vpop.f32.mrf.mxu0
  %v333 = vadd.f32 %v56, %v332
  %v334 = vpop.f32.mrf.mxu0
  %335 = vmatprep.mubr.bf16.mxu0 0
  %336 = vmatmul.mubr.bf16.gmra.mxu0 %v191
  %v337 = vpop.f32.mrf.mxu0
  %v338 = vadd.f32 %v56, %v337
  %v339 = vpop.f32.mrf.mxu0
  %v340 = vpop.f32.mrf.mxu0
  %v341 = vadd.f32 %v56, %v340
  %v342 = vpop.f32.mrf.mxu0
  %343 = vmatprep.mubr.bf16.mxu0 0
  %344 = vmatmul.mubr.bf16.gmra.mxu0 %v194
  %v345 = vpop.f32.mrf.mxu0
  %v346 = vadd.f32 %v56, %v345
  %v347 = vpop.f32.mrf.mxu0
  %v348 = vpop.f32.mrf.mxu0
  %v349 = vadd.f32 %v56, %v348
  %v350 = vpop.f32.mrf.mxu0
  %351 = vmatprep.mubr.bf16.mxu0 0
  %352 = vmatmul.mubr.bf16.gmra.mxu0 %v197
  %v353 = vpop.f32.mrf.mxu0
  %v354 = vadd.f32 %v56, %v353
  %v355 = vpop.f32.mrf.mxu0
  %v356 = vpop.f32.mrf.mxu0
  %v357 = vadd.f32 %v56, %v356
  %v358 = vpop.f32.mrf.mxu0
  %359 = vdwg.mxu0
  %v360 = vmul.f32 %v234, 0.5
  %v361 = vmul.f32 %v237, 0.5
  %v362 = vmul.f32 %v242, 0.5
  %v363 = vmul.f32 %v245, 0.5
  %v364 = vmul.f32 %v250, 0.5
  %v365 = vmul.f32 %v253, 0.5
  %v366 = vmul.f32 %v258, 0.5
  %v367 = vmul.f32 %v261, 0.5
  %v368 = vmul.f32 %v266, 0.5
  %v369 = vmul.f32 %v269, 0.5
  %v370 = vmul.f32 %v274, 0.5
  %v371 = vmul.f32 %v277, 0.5
  %v372 = vmul.f32 %v282, 0.5
  %v373 = vmul.f32 %v285, 0.5
  %v374 = vmul.f32 %v290, 0.5
  %v375 = vmul.f32 %v293, 0.5
  %v376 = vmul.f32 %v298, 0.5
  %v377 = vmul.f32 %v301, 0.5
  %v378 = vmul.f32 %v306, 0.5
  %v379 = vmul.f32 %v309, 0.5
  %v380 = vmul.f32 %v314, 0.5
  %v381 = vmul.f32 %v317, 0.5
  %v382 = vmul.f32 %v322, 0.5
  %v383 = vmul.f32 %v325, 0.5
  %v384 = vmul.f32 %v330, 0.5
  %v385 = vmul.f32 %v333, 0.5
  %v386 = vmul.f32 %v338, 0.5
  %v387 = vmul.f32 %v341, 0.5
  %v388 = vmul.f32 %v346, 0.5
  %v389 = vmul.f32 %v349, 0.5
  %v390 = vmul.f32 %v354, 0.5
  %v391 = vmul.f32 %v357, 0.5
  %v392 = vmul.f32 %v234, 0.70710677
  %v393 = vmul.f32 %v237, 0.70710677
  %v394 = vmul.f32 %v242, 0.70710677
  %v395 = vmul.f32 %v245, 0.70710677
  %v396 = vmul.f32 %v250, 0.70710677
  %v397 = vmul.f32 %v253, 0.70710677
  %v398 = vmul.f32 %v258, 0.70710677
  %v399 = vmul.f32 %v261, 0.70710677
  %v400 = vmul.f32 %v266, 0.70710677
  %v401 = vmul.f32 %v269, 0.70710677
  %v402 = vmul.f32 %v274, 0.70710677
  %v403 = vmul.f32 %v277, 0.70710677
  %v404 = vmul.f32 %v282, 0.70710677
  %v405 = vmul.f32 %v285, 0.70710677
  %v406 = vmul.f32 %v290, 0.70710677
  %v407 = vmul.f32 %v293, 0.70710677
  %v408 = vmul.f32 %v298, 0.70710677
  %v409 = vmul.f32 %v301, 0.70710677
  %v410 = vmul.f32 %v306, 0.70710677
  %v411 = vmul.f32 %v309, 0.70710677
  %v412 = vmul.f32 %v314, 0.70710677
  %v413 = vmul.f32 %v317, 0.70710677
  %v414 = vmul.f32 %v322, 0.70710677
  %v415 = vmul.f32 %v325, 0.70710677
  %v416 = vmul.f32 %v330, 0.70710677
  %v417 = vmul.f32 %v333, 0.70710677
  %v418 = vmul.f32 %v338, 0.70710677
  %v419 = vmul.f32 %v341, 0.70710677
  %v420 = vmul.f32 %v346, 0.70710677
  %v421 = vmul.f32 %v349, 0.70710677
  %v422 = vmul.f32 %v354, 0.70710677
  %v423 = vmul.f32 %v357, 0.70710677
  %v424 = verf.f32.pop %v392
  %v425 = verf.f32.pop %v393
  %v426 = verf.f32.pop %v394
  %v427 = verf.f32.pop %v395
  %v428 = verf.f32.pop %v396
  %v429 = verf.f32.pop %v397
  %v430 = verf.f32.pop %v398
  %v431 = verf.f32.pop %v399
  %v432 = verf.f32.pop %v400
  %v433 = verf.f32.pop %v401
  %v434 = verf.f32.pop %v402
  %v435 = verf.f32.pop %v403
  %v436 = verf.f32.pop %v404
  %v437 = verf.f32.pop %v405
  %v438 = verf.f32.pop %v406
  %v439 = verf.f32.pop %v407
  %v440 = verf.f32.pop %v408
  %v441 = verf.f32.pop %v409
  %v442 = verf.f32.pop %v410
  %v443 = verf.f32.pop %v411
  %v444 = verf.f32.pop %v412
  %v445 = verf.f32.pop %v413
  %v446 = verf.f32.pop %v414
  %v447 = verf.f32.pop %v415
  %v448 = verf.f32.pop %v416
  %v449 = verf.f32.pop %v417
  %v450 = verf.f32.pop %v418
  %v451 = verf.f32.pop %v419
  %v452 = verf.f32.pop %v420
  %v453 = verf.f32.pop %v421
  %v454 = verf.f32.pop %v422
  %v455 = verf.f32.pop %v423
  %v456 = vadd.f32 %v424, 1.0
  %v457 = vadd.f32 %v425, 1.0
  %v458 = vadd.f32 %v426, 1.0
  %v459 = vadd.f32 %v427, 1.0
  %v460 = vadd.f32 %v428, 1.0
  %v461 = vadd.f32 %v429, 1.0
  %v462 = vadd.f32 %v430, 1.0
  %v463 = vadd.f32 %v431, 1.0
  %v464 = vadd.f32 %v432, 1.0
  %v465 = vadd.f32 %v433, 1.0
  %v466 = vadd.f32 %v434, 1.0
  %v467 = vadd.f32 %v435, 1.0
  %v468 = vadd.f32 %v436, 1.0
  %v469 = vadd.f32 %v437, 1.0
  %v470 = vadd.f32 %v438, 1.0
  %v471 = vadd.f32 %v439, 1.0
  %v472 = vadd.f32 %v440, 1.0
  %v473 = vadd.f32 %v441, 1.0
  %v474 = vadd.f32 %v442, 1.0
  %v475 = vadd.f32 %v443, 1.0
  %v476 = vadd.f32 %v444, 1.0
  %v477 = vadd.f32 %v445, 1.0
  %v478 = vadd.f32 %v446, 1.0
  %v479 = vadd.f32 %v447, 1.0
  %v480 = vadd.f32 %v448, 1.0
  %v481 = vadd.f32 %v449, 1.0
  %v482 = vadd.f32 %v450, 1.0
  %v483 = vadd.f32 %v451, 1.0
  %v484 = vadd.f32 %v452, 1.0
  %v485 = vadd.f32 %v453, 1.0
  %v486 = vadd.f32 %v454, 1.0
  %v487 = vadd.f32 %v455, 1.0
  %v488 = vmul.f32 %v360, %v456
  %v489 = vmul.f32 %v361, %v457
  %v490 = vmul.f32 %v362, %v458
  %v491 = vmul.f32 %v363, %v459
  %v492 = vmul.f32 %v364, %v460
  %v493 = vmul.f32 %v365, %v461
  %v494 = vmul.f32 %v366, %v462
  %v495 = vmul.f32 %v367, %v463
  %v496 = vmul.f32 %v368, %v464
  %v497 = vmul.f32 %v369, %v465
  %v498 = vmul.f32 %v370, %v466
  %v499 = vmul.f32 %v371, %v467
  %v500 = vmul.f32 %v372, %v468
  %v501 = vmul.f32 %v373, %v469
  %v502 = vmul.f32 %v374, %v470
  %v503 = vmul.f32 %v375, %v471
  %v504 = vmul.f32 %v376, %v472
  %v505 = vmul.f32 %v377, %v473
  %v506 = vmul.f32 %v378, %v474
  %v507 = vmul.f32 %v379, %v475
  %v508 = vmul.f32 %v380, %v476
  %v509 = vmul.f32 %v381, %v477
  %v510 = vmul.f32 %v382, %v478
  %v511 = vmul.f32 %v383, %v479
  %v512 = vmul.f32 %v384, %v480
  %v513 = vmul.f32 %v385, %v481
  %v514 = vmul.f32 %v386, %v482
  %v515 = vmul.f32 %v387, %v483
  %v516 = vmul.f32 %v388, %v484
  %v517 = vmul.f32 %v389, %v485
  %v518 = vmul.f32 %v390, %v486
  %v519 = vmul.f32 %v391, %v487
  %vm520 = vcmask 523264
  %521 = vst.msk [vmem:[%s3] sm:$0xff] %vm520, %v488
  %522 = vst.msk [vmem:[%s3 + $0x8] sm:$0xff] %vm520, %v489
  %523 = vst.msk [vmem:[%s3 + $0x10] sm:$0xff] %vm520, %v490
  %524 = vst.msk [vmem:[%s3 + $0x18] sm:$0xff] %vm520, %v491
  %525 = vst.msk [vmem:[%s3 + $0x20] sm:$0xff] %vm520, %v492
  %526 = vst.msk [vmem:[%s3 + $0x28] sm:$0xff] %vm520, %v493
  %527 = vst.msk [vmem:[%s3 + $0x30] sm:$0xff] %vm520, %v494
  %528 = vst.msk [vmem:[%s3 + $0x38] sm:$0xff] %vm520, %v495
  %529 = vst.msk [vmem:[%s3 + $0x40] sm:$0xff] %vm520, %v496
  %530 = vst.msk [vmem:[%s3 + $0x48] sm:$0xff] %vm520, %v497
  %531 = vst.msk [vmem:[%s3 + $0x50] sm:$0xff] %vm520, %v498
  %532 = vst.msk [vmem:[%s3 + $0x58] sm:$0xff] %vm520, %v499
  %533 = vst.msk [vmem:[%s3 + $0x60] sm:$0xff] %vm520, %v500
  %534 = vst.msk [vmem:[%s3 + $0x68] sm:$0xff] %vm520, %v501
  %535 = vst.msk [vmem:[%s3 + $0x70] sm:$0xff] %vm520, %v502
  %536 = vst.msk [vmem:[%s3 + $0x78] sm:$0xff] %vm520, %v503
  %537 = vst.msk [vmem:[%s3 + $0x80] sm:$0xff] %vm520, %v504
  %538 = vst.msk [vmem:[%s3 + $0x88] sm:$0xff] %vm520, %v505
  %539 = vst.msk [vmem:[%s3 + $0x90] sm:$0xff] %vm520, %v506
  %540 = vst.msk [vmem:[%s3 + $0x98] sm:$0xff] %vm520, %v507
  %541 = vst.msk [vmem:[%s3 + $0xa0] sm:$0xff] %vm520, %v508
  %542 = vst.msk [vmem:[%s3 + $0xa8] sm:$0xff] %vm520, %v509
  %543 = vst.msk [vmem:[%s3 + $0xb0] sm:$0xff] %vm520, %v510
  %544 = vst.msk [vmem:[%s3 + $0xb8] sm:$0xff] %vm520, %v511
  %545 = vst.msk [vmem:[%s3 + $0xc0] sm:$0xff] %vm520, %v512
  %546 = vst.msk [vmem:[%s3 + $0xc8] sm:$0xff] %vm520, %v513
  %547 = vst.msk [vmem:[%s3 + $0xd0] sm:$0xff] %vm520, %v514
  %548 = vst.msk [vmem:[%s3 + $0xd8] sm:$0xff] %vm520, %v515
  %549 = vst.msk [vmem:[%s3 + $0xe0] sm:$0xff] %vm520, %v516
  %550 = vst.msk [vmem:[%s3 + $0xe8] sm:$0xff] %vm520, %v517
  %551 = vst.msk [vmem:[%s3 + $0xf0] sm:$0xff] %vm520, %v518
  %552 = vst.msk [vmem:[%s3 + $0xf8] sm:$0xff] %vm520, %v519
  // Predicated region
  $region14: #{tpu_custom_call.1} parent=0 // pred_check
    _
  $region15: #{tpu_custom_call.1} parent=0 // pred_check_branch
    %554 = sbr.rel (0) target = $region17
  $region16: #{tpu_custom_call.1} parent=0 // pred_region
    _
  $region17: #{tpu_custom_call.1} parent=0 // pred_fallthru
    _
  // Predicated region
  $region18: #{tpu_custom_call.1} parent=0 // pred_check
    _
  $region19: #{tpu_custom_call.1} parent=0 // pred_check_branch
    %556 = sbr.rel (0) target = $region21
  $region20: #{tpu_custom_call.1} parent=0 // pred_region
    _
  $region21: #{tpu_custom_call.1} parent=0 // pred_fallthru
    _

// kernel: tpu_custom_call.1
$region0: #{tpu_custom_call.1}
  #allocation0 [shape = 'u32[]', space=smem, size = 0x4, offset = 0x4, fixed_abs, tag = 'smem constant byte address 0x4 - core index']
  #allocation1 [shape = 'u32[144,128]{1,0:T(1,128)}', space=vmem, size = 0x12000, scoped, tag = 'internal scratch']
  %s0 = inlined_call_operand.vmem [shape: bf16[256,32], index: 0, kind: input, shape index: {}]
  %s1 = inlined_call_operand.vmem [shape: bf16[32,64], index: 1, kind: input, shape index: {}]
  %s2 = inlined_call_operand.vmem [shape: f32[1,64], index: 2, kind: input, shape index: {}]
  %s3 = inlined_call_operand.vmem [shape: f32[256,64], index: 3, kind: output, shape index: {}]
  %s4 = sld [smem:[#allocation0]]
  $region22: #{tpu_custom_call.1} parent=0
    _
  %s6 = ssub.s32 1, %s4
  %s7 = scalar_select 0, %s6, %s4
  // Predicated region
  $region2: #{tpu_custom_call.1} parent=0 // pred_check
    _
  $region3: #{tpu_custom_call.1} parent=0 // pred_check_branch
    %9 = sbr.rel (0) target = $region5
  $region4: #{tpu_custom_call.1} parent=0 // pred_region
    _
  $region5: #{tpu_custom_call.1} parent=0 // pred_fallthru
    _
  // Predicated region
  $region6: #{tpu_custom_call.1} parent=0 // pred_check
    _
  $region7: #{tpu_custom_call.1} parent=0 // pred_check_branch
    %11 = sbr.rel (0) target = $region9
  $region8: #{tpu_custom_call.1} parent=0 // pred_region
    _
  $region9: #{tpu_custom_call.1} parent=0 // pred_fallthru
    _
  // Predicated region
  $region10: #{tpu_custom_call.1} parent=0 // pred_check
    _
  $region11: #{tpu_custom_call.1} parent=0 // pred_check_branch
    %13 = sbr.rel (0) target = $region13
  $region12: #{tpu_custom_call.1} parent=0 // pred_region
    _
  $region13: #{tpu_custom_call.1} parent=0 // pred_fallthru
    _
  %v15 = vld [vmem:[%s0] sm:$0xf]
  %v16 = vld [vmem:[%s0 + $0x4] sm:$0xf]
  %v17 = vld [vmem:[%s0 + $0x8] sm:$0xf]
  %v18 = vld [vmem:[%s0 + $0xc] sm:$0xf]
  %v19 = vld [vmem:[%s0 + $0x10] sm:$0xf]
  %v20 = vld [vmem:[%s0 + $0x14] sm:$0xf]
  %v21 = vld [vmem:[%s0 + $0x18] sm:$0xf]
  %v22 = vld [vmem:[%s0 + $0x1c] sm:$0xf]
  %v23 = vld [vmem:[%s0 + $0x20] sm:$0xf]
  %v24 = vld [vmem:[%s0 + $0x24] sm:$0xf]
  %v25 = vld [vmem:[%s0 + $0x28] sm:$0xf]
  %v26 = vld [vmem:[%s0 + $0x2c] sm:$0xf]
  %v27 = vld [vmem:[%s0 + $0x30] sm:$0xf]
  %v28 = vld [vmem:[%s0 + $0x34] sm:$0xf]
  %v29 = vld [vmem:[%s0 + $0x38] sm:$0xf]
  %v30 = vld [vmem:[%s0 + $0x3c] sm:$0xf]
  %v31 = vld [vmem:[%s0 + $0x40] sm:$0xf]
  %v32 = vld [vmem:[%s0 + $0x44] sm:$0xf]
  %v33 = vld [vmem:[%s0 + $0x48] sm:$0xf]
  %v34 = vld [vmem:[%s0 + $0x4c] sm:$0xf]
  %v35 = vld [vmem:[%s0 + $0x50] sm:$0xf]
  %v36 = vld [vmem:[%s0 + $0x54] sm:$0xf]
  %v37 = vld [vmem:[%s0 + $0x58] sm:$0xf]
  %v38 = vld [vmem:[%s0 + $0x5c] sm:$0xf]
  %v39 = vld [vmem:[%s0 + $0x60] sm:$0xf]
  %v40 = vld [vmem:[%s0 + $0x64] sm:$0xf]
  %v41 = vld [vmem:[%s0 + $0x68] sm:$0xf]
  %v42 = vld [vmem:[%s0 + $0x6c] sm:$0xf]
  %v43 = vld [vmem:[%s0 + $0x70] sm:$0xf]
  %v44 = vld [vmem:[%s0 + $0x74] sm:$0xf]
  %v45 = vld [vmem:[%s0 + $0x78] sm:$0xf]
  %v46 = vld [vmem:[%s0 + $0x7c] sm:$0xf]
  %v47 = vld [vmem:[%s1] sm:$0xf]
  %v48 = vld [vmem:[%s1 + $0x4] sm:$0xf]
  %v49 = vld [vmem:[%s1 + $0x8] sm:$0xf]
  %v50 = vld [vmem:[%s1 + $0xc] sm:$0xf]
  %v51 = vld [vmem:[%s2] sm:$0x1]
  %v53 = vlaneseq
  %v54 = vshrl.u32 %v53, 7
  %v55 = vsub.s32 0, %v54
  %v56 = vrot.slane %v51, %v55
  %v90 = vunpack.c.l.b16 %v15
  %v91 = vunpack.c.l.b16 %v16
  %v92 = vunpack.c.l.b16 %v17
  %v93 = vunpack.c.l.b16 %v18
  %v94 = vunpack.c.l.b16 %v19
  %v95 = vunpack.c.l.b16 %v20
  %v96 = vunpack.c.l.b16 %v21
  %v97 = vunpack.c.l.b16 %v22
  %v98 = vunpack.c.l.b16 %v23
  %v99 = vunpack.c.l.b16 %v24
  %v100 = vunpack.c.l.b16 %v25
  %v101 = vunpack.c.l.b16 %v26
  %v102 = vunpack.c.l.b16 %v27
  %v103 = vunpack.c.l.b16 %v28
  %v104 = vunpack.c.l.b16 %v29
  %v105 = vunpack.c.l.b16 %v30
  %v106 = vunpack.c.l.b16 %v31
  %v107 = vunpack.c.l.b16 %v32
  %v108 = vunpack.c.l.b16 %v33
  %v109 = vunpack.c.l.b16 %v34
  %v110 = vunpack.c.l.b16 %v35
  %v111 = vunpack.c.l.b16 %v36
  %v112 = vunpack.c.l.b16 %v37
  %v113 = vunpack.c.l.b16 %v38
  %v114 = vunpack.c.l.b16 %v39
  %v115 = vunpack.c.l.b16 %v40
  %v116 = vunpack.c.l.b16 %v41
  %v117 = vunpack.c.l.b16 %v42
  %v118 = vunpack.c.l.b16 %v43
  %v119 = vunpack.c.l.b16 %v44
  %v120 = vunpack.c.l.b16 %v45
  %v121 = vunpack.c.l.b16 %v46
  %v122 = vpack.c.b16 %v91, %v90
  %v123 = vpack.c.b16 %v93, %v92
  %v124 = vpack.c.b16 %v95, %v94
  %v125 = vpack.c.b16 %v97, %v96
  %v126 = vpack.c.b16 %v99, %v98
  %v127 = vpack.c.b16 %v101, %v100
  %v128 = vpack.c.b16 %v103, %v102
  %v129 = vpack.c.b16 %v105, %v104
  %v130 = vpack.c.b16 %v107, %v106
  %v131 = vpack.c.b16 %v109, %v108
  %v132 = vpack.c.b16 %v111, %v110
  %v133 = vpack.c.b16 %v113, %v112
  %v134 = vpack.c.b16 %v115, %v114
  %v135 = vpack.c.b16 %v117, %v116
  %v136 = vpack.c.b16 %v119, %v118
  %v137 = vpack.c.b16 %v121, %v120
  %v142 = vunpack.c.l.b16 %v47
  %v143 = vunpack.c.l.b16 %v48
  %v144 = vunpack.c.l.b16 %v49
  %v145 = vunpack.c.l.b16 %v50
  %v146 = vpack.c.b16 %v143, %v142
  %v147 = vpack.c.b16 %v145, %v144
  %vm150 = vcmask 261120
  %v152 = vsel %vm150, %v122, 0
  %v155 = vsel %vm150, %v123, 0
  %v158 = vsel %vm150, %v124, 0
  %v161 = vsel %vm150, %v125, 0
  %v164 = vsel %vm150, %v126, 0
  %v167 = vsel %vm150, %v127, 0
  %v170 = vsel %vm150, %v128, 0
  %v173 = vsel %vm150, %v129, 0
  %v176 = vsel %vm150, %v130, 0
  %v179 = vsel %vm150, %v131, 0
  %v182 = vsel %vm150, %v132, 0
  %v185 = vsel %vm150, %v133, 0
  %v188 = vsel %vm150, %v134, 0
  %v191 = vsel %vm150, %v135, 0
  %v194 = vsel %vm150, %v136, 0
  %v197 = vsel %vm150, %v137, 0
  %199 = vmatprep.subr.bf16.mxu0 0
  %200 = vmatpush1.bf16.msra.mxu0 0
  %201 = vmatprep.subr.bf16.mxu0 0
  %202 = vmatpush1.bf16.msra.mxu0 0
  %203 = vmatprep.subr.bf16.mxu0 0
  %204 = vmatpush1.bf16.msra.mxu0 0
  %205 = vmatprep.subr.bf16.mxu0 0
  %206 = vmatpush1.bf16.msra.mxu0 0
  %207 = vmatprep.subr.bf16.mxu0 0
  %208 = vmatpush1.bf16.msra.mxu0 0
  %209 = vmatprep.subr.bf16.mxu0 0
  %210 = vmatpush1.bf16.msra.mxu0 0
  %211 = vmatprep.subr.bf16.mxu0 0
  %212 = vmatpush1.bf16.msra.mxu0 %v147
  %213 = vmatprep.subr.bf16.mxu0 0
  %214 = vmatpush1.bf16.msra.mxu0 %v146
  %215 = vmatprep.subr.bf16.mxu0 0
  %216 = vmatpush2.bf16.msra.mxu0 0
  %217 = vmatprep.subr.bf16.mxu0 0
  %218 = vmatpush2.bf16.msra.mxu0 0
  %219 = vmatprep.subr.bf16.mxu0 0
  %220 = vmatpush2.bf16.msra.mxu0 0
  %221 = vmatprep.subr.bf16.mxu0 0
  %222 = vmatpush2.bf16.msra.mxu0 0
  %223 = vmatprep.subr.bf16.mxu0 0
  %224 = vmatpush2.bf16.msra.mxu0 0
  %225 = vmatprep.subr.bf16.mxu0 0
  %226 = vmatpush2.bf16.msra.mxu0 0
  %227 = vmatprep.subr.bf16.mxu0 0
  %228 = vmatpush2.bf16.msra.mxu0 0
  %229 = vmatprep.subr.bf16.mxu0 0
  %230 = vmatpush2.bf16.msra.mxu0 0
  %231 = vmatprep.mubr.bf16.mxu0 0
  %232 = vmatmul.mubr.bf16.gmra.mxu0 %v152
  %v233 = vpop.f32.mrf.mxu0
  %v234 = vadd.f32 %v56, %v233
  %v235 = vpop.f32.mrf.mxu0
  %v236 = vpop.f32.mrf.mxu0
  %v237 = vadd.f32 %v56, %v236
  %v238 = vpop.f32.mrf.mxu0
  %239 = vmatprep.mubr.bf16.mxu0 0
  %240 = vmatmul.mubr.bf16.gmra.mxu0 %v155
  %v241 = vpop.f32.mrf.mxu0
  %v242 = vadd.f32 %v56, %v241
  %v243 = vpop.f32.mrf.mxu0
  %v244 = vpop.f32.mrf.mxu0
  %v245 = vadd.f32 %v56, %v244
  %v246 = vpop.f32.mrf.mxu0
  %247 = vmatprep.mubr.bf16.mxu0 0
  %248 = vmatmul.mubr.bf16.gmra.mxu0 %v158
  %v249 = vpop.f32.mrf.mxu0
  %v250 = vadd.f32 %v56, %v249
  %v251 = vpop.f32.mrf.mxu0
  %v252 = vpop.f32.mrf.mxu0
  %v253 = vadd.f32 %v56, %v252
  %v254 = vpop.f32.mrf.mxu0
  %255 = vmatprep.mubr.bf16.mxu0 0
  %256 = vmatmul.mubr.bf16.gmra.mxu0 %v161
  %v257 = vpop.f32.mrf.mxu0
  %v258 = vadd.f32 %v56, %v257
  %v259 = vpop.f32.mrf.mxu0
  %v260 = vpop.f32.mrf.mxu0
  %v261 = vadd.f32 %v56, %v260
  %v262 = vpop.f32.mrf.mxu0
  %263 = vmatprep.mubr.bf16.mxu0 0
  %264 = vmatmul.mubr.bf16.gmra.mxu0 %v164
  %v265 = vpop.f32.mrf.mxu0
  %v266 = vadd.f32 %v56, %v265
  %v267 = vpop.f32.mrf.mxu0
  %v268 = vpop.f32.mrf.mxu0
  %v269 = vadd.f32 %v56, %v268
  %v270 = vpop.f32.mrf.mxu0
  %271 = vmatprep.mubr.bf16.mxu0 0
  %272 = vmatmul.mubr.bf16.gmra.mxu0 %v167
  %v273 = vpop.f32.mrf.mxu0
  %v274 = vadd.f32 %v56, %v273
  %v275 = vpop.f32.mrf.mxu0
  %v276 = vpop.f32.mrf.mxu0
  %v277 = vadd.f32 %v56, %v276
  %v278 = vpop.f32.mrf.mxu0
  %279 = vmatprep.mubr.bf16.mxu0 0
  %280 = vmatmul.mubr.bf16.gmra.mxu0 %v170
  %v281 = vpop.f32.mrf.mxu0
  %v282 = vadd.f32 %v56, %v281
  %v283 = vpop.f32.mrf.mxu0
  %v284 = vpop.f32.mrf.mxu0
  %v285 = vadd.f32 %v56, %v284
  %v286 = vpop.f32.mrf.mxu0
  %287 = vmatprep.mubr.bf16.mxu0 0
  %288 = vmatmul.mubr.bf16.gmra.mxu0 %v173
  %v289 = vpop.f32.mrf.mxu0
  %v290 = vadd.f32 %v56, %v289
  %v291 = vpop.f32.mrf.mxu0
  %v292 = vpop.f32.mrf.mxu0
  %v293 = vadd.f32 %v56, %v292
  %v294 = vpop.f32.mrf.mxu0
  %295 = vmatprep.mubr.bf16.mxu0 0
  %296 = vmatmul.mubr.bf16.gmra.mxu0 %v176
  %v297 = vpop.f32.mrf.mxu0
  %v298 = vadd.f32 %v56, %v297
  %v299 = vpop.f32.mrf.mxu0
  %v300 = vpop.f32.mrf.mxu0
  %v301 = vadd.f32 %v56, %v300
  %v302 = vpop.f32.mrf.mxu0
  %303 = vmatprep.mubr.bf16.mxu0 0
  %304 = vmatmul.mubr.bf16.gmra.mxu0 %v179
  %v305 = vpop.f32.mrf.mxu0
  %v306 = vadd.f32 %v56, %v305
  %v307 = vpop.f32.mrf.mxu0
  %v308 = vpop.f32.mrf.mxu0
  %v309 = vadd.f32 %v56, %v308
  %v310 = vpop.f32.mrf.mxu0
  %311 = vmatprep.mubr.bf16.mxu0 0
  %312 = vmatmul.mubr.bf16.gmra.mxu0 %v182
  %v313 = vpop.f32.mrf.mxu0
  %v314 = vadd.f32 %v56, %v313
  %v315 = vpop.f32.mrf.mxu0
  %v316 = vpop.f32.mrf.mxu0
  %v317 = vadd.f32 %v56, %v316
  %v318 = vpop.f32.mrf.mxu0
  %319 = vmatprep.mubr.bf16.mxu0 0
  %320 = vmatmul.mubr.bf16.gmra.mxu0 %v185
  %v321 = vpop.f32.mrf.mxu0
  %v322 = vadd.f32 %v56, %v321
  %v323 = vpop.f32.mrf.mxu0
  %v324 = vpop.f32.mrf.mxu0
  %v325 = vadd.f32 %v56, %v324
  %v326 = vpop.f32.mrf.mxu0
  %327 = vmatprep.mubr.bf16.mxu0 0
  %328 = vmatmul.mubr.bf16.gmra.mxu0 %v188
  %v329 = vpop.f32.mrf.mxu0
  %v330 = vadd.f32 %v56, %v329
  %v331 = vpop.f32.mrf.mxu0
  %v332 = vpop.f32.mrf.mxu0
  %v333 = vadd.f32 %v56, %v332
  %v334 = vpop.f32.mrf.mxu0
  %335 = vmatprep.mubr.bf16.mxu0 0
  %336 = vmatmul.mubr.bf16.gmra.mxu0 %v191
  %v337 = vpop.f32.mrf.mxu0
  %v338 = vadd.f32 %v56, %v337
  %v339 = vpop.f32.mrf.mxu0
  %v340 = vpop.f32.mrf.mxu0
  %v341 = vadd.f32 %v56, %v340
  %v342 = vpop.f32.mrf.mxu0
  %343 = vmatprep.mubr.bf16.mxu0 0
  %344 = vmatmul.mubr.bf16.gmra.mxu0 %v194
  %v345 = vpop.f32.mrf.mxu0
  %v346 = vadd.f32 %v56, %v345
  %v347 = vpop.f32.mrf.mxu0
  %v348 = vpop.f32.mrf.mxu0
  %v349 = vadd.f32 %v56, %v348
  %v350 = vpop.f32.mrf.mxu0
  %351 = vmatprep.mubr.bf16.mxu0 0
  %352 = vmatmul.mubr.bf16.gmra.mxu0 %v197
  %v353 = vpop.f32.mrf.mxu0
  %v354 = vadd.f32 %v56, %v353
  %v355 = vpop.f32.mrf.mxu0
  %v356 = vpop.f32.mrf.mxu0
  %v357 = vadd.f32 %v56, %v356
  %v358 = vpop.f32.mrf.mxu0
  %359 = vdwg.mxu0
  %v360 = vmul.f32 %v234, 0.5
  %v361 = vmul.f32 %v237, 0.5
  %v362 = vmul.f32 %v242, 0.5
  %v363 = vmul.f32 %v245, 0.5
  %v364 = vmul.f32 %v250, 0.5
  %v365 = vmul.f32 %v253, 0.5
  %v366 = vmul.f32 %v258, 0.5
  %v367 = vmul.f32 %v261, 0.5
  %v368 = vmul.f32 %v266, 0.5
  %v369 = vmul.f32 %v269, 0.5
  %v370 = vmul.f32 %v274, 0.5
  %v371 = vmul.f32 %v277, 0.5
  %v372 = vmul.f32 %v282, 0.5
  %v373 = vmul.f32 %v285, 0.5
  %v374 = vmul.f32 %v290, 0.5
  %v375 = vmul.f32 %v293, 0.5
  %v376 = vmul.f32 %v298, 0.5
  %v377 = vmul.f32 %v301, 0.5
  %v378 = vmul.f32 %v306, 0.5
  %v379 = vmul.f32 %v309, 0.5
  %v380 = vmul.f32 %v314, 0.5
  %v381 = vmul.f32 %v317, 0.5
  %v382 = vmul.f32 %v322, 0.5
  %v383 = vmul.f32 %v325, 0.5
  %v384 = vmul.f32 %v330, 0.5
  %v385 = vmul.f32 %v333, 0.5
  %v386 = vmul.f32 %v338, 0.5
  %v387 = vmul.f32 %v341, 0.5
  %v388 = vmul.f32 %v346, 0.5
  %v389 = vmul.f32 %v349, 0.5
  %v390 = vmul.f32 %v354, 0.5
  %v391 = vmul.f32 %v357, 0.5
  %v392 = vmul.f32 %v234, 0.70710677
  %v393 = vmul.f32 %v237, 0.70710677
  %v394 = vmul.f32 %v242, 0.70710677
  %v395 = vmul.f32 %v245, 0.70710677
  %v396 = vmul.f32 %v250, 0.70710677
  %v397 = vmul.f32 %v253, 0.70710677
  %v398 = vmul.f32 %v258, 0.70710677
  %v399 = vmul.f32 %v261, 0.70710677
  %v400 = vmul.f32 %v266, 0.70710677
  %v401 = vmul.f32 %v269, 0.70710677
  %v402 = vmul.f32 %v274, 0.70710677
  %v403 = vmul.f32 %v277, 0.70710677
  %v404 = vmul.f32 %v282, 0.70710677
  %v405 = vmul.f32 %v285, 0.70710677
  %v406 = vmul.f32 %v290, 0.70710677
  %v407 = vmul.f32 %v293, 0.70710677
  %v408 = vmul.f32 %v298, 0.70710677
  %v409 = vmul.f32 %v301, 0.70710677
  %v410 = vmul.f32 %v306, 0.70710677
  %v411 = vmul.f32 %v309, 0.70710677
  %v412 = vmul.f32 %v314, 0.70710677
  %v413 = vmul.f32 %v317, 0.70710677
  %v414 = vmul.f32 %v322, 0.70710677
  %v415 = vmul.f32 %v325, 0.70710677
  %v416 = vmul.f32 %v330, 0.70710677
  %v417 = vmul.f32 %v333, 0.70710677
  %v418 = vmul.f32 %v338, 0.70710677
  %v419 = vmul.f32 %v341, 0.70710677
  %v420 = vmul.f32 %v346, 0.70710677
  %v421 = vmul.f32 %v349, 0.70710677
  %v422 = vmul.f32 %v354, 0.70710677
  %v423 = vmul.f32 %v357, 0.70710677
  %v424 = verf.f32.pop %v392
  %v425 = verf.f32.pop %v393
  %v426 = verf.f32.pop %v394
  %v427 = verf.f32.pop %v395
  %v428 = verf.f32.pop %v396
  %v429 = verf.f32.pop %v397
  %v430 = verf.f32.pop %v398
  %v431 = verf.f32.pop %v399
  %v432 = verf.f32.pop %v400
  %v433 = verf.f32.pop %v401
  %v434 = verf.f32.pop %v402
  %v435 = verf.f32.pop %v403
  %v436 = verf.f32.pop %v404
  %v437 = verf.f32.pop %v405
  %v438 = verf.f32.pop %v406
  %v439 = verf.f32.pop %v407
  %v440 = verf.f32.pop %v408
  %v441 = verf.f32.pop %v409
  %v442 = verf.f32.pop %v410
  %v443 = verf.f32.pop %v411
  %v444 = verf.f32.pop %v412
  %v445 = verf.f32.pop %v413
  %v446 = verf.f32.pop %v414
  %v447 = verf.f32.pop %v415
  %v448 = verf.f32.pop %v416
  %v449 = verf.f32.pop %v417
  %v450 = verf.f32.pop %v418
  %v451 = verf.f32.pop %v419
  %v452 = verf.f32.pop %v420
  %v453 = verf.f32.pop %v421
  %v454 = verf.f32.pop %v422
  %v455 = verf.f32.pop %v423
  %v456 = vadd.f32 %v424, 1.0
  %v457 = vadd.f32 %v425, 1.0
  %v458 = vadd.f32 %v426, 1.0
  %v459 = vadd.f32 %v427, 1.0
  %v460 = vadd.f32 %v428, 1.0
  %v461 = vadd.f32 %v429, 1.0
  %v462 = vadd.f32 %v430, 1.0
  %v463 = vadd.f32 %v431, 1.0
  %v464 = vadd.f32 %v432, 1.0
  %v465 = vadd.f32 %v433, 1.0
  %v466 = vadd.f32 %v434, 1.0
  %v467 = vadd.f32 %v435, 1.0
  %v468 = vadd.f32 %v436, 1.0
  %v469 = vadd.f32 %v437, 1.0
  %v470 = vadd.f32 %v438, 1.0
  %v471 = vadd.f32 %v439, 1.0
  %v472 = vadd.f32 %v440, 1.0
  %v473 = vadd.f32 %v441, 1.0
  %v474 = vadd.f32 %v442, 1.0
  %v475 = vadd.f32 %v443, 1.0
  %v476 = vadd.f32 %v444, 1.0
  %v477 = vadd.f32 %v445, 1.0
  %v478 = vadd.f32 %v446, 1.0
  %v479 = vadd.f32 %v447, 1.0
  %v480 = vadd.f32 %v448, 1.0
  %v481 = vadd.f32 %v449, 1.0
  %v482 = vadd.f32 %v450, 1.0
  %v483 = vadd.f32 %v451, 1.0
  %v484 = vadd.f32 %v452, 1.0
  %v485 = vadd.f32 %v453, 1.0
  %v486 = vadd.f32 %v454, 1.0
  %v487 = vadd.f32 %v455, 1.0
  %v488 = vmul.f32 %v360, %v456
  %v489 = vmul.f32 %v361, %v457
  %v490 = vmul.f32 %v362, %v458
  %v491 = vmul.f32 %v363, %v459
  %v492 = vmul.f32 %v364, %v460
  %v493 = vmul.f32 %v365, %v461
  %v494 = vmul.f32 %v366, %v462
  %v495 = vmul.f32 %v367, %v463
  %v496 = vmul.f32 %v368, %v464
  %v497 = vmul.f32 %v369, %v465
  %v498 = vmul.f32 %v370, %v466
  %v499 = vmul.f32 %v371, %v467
  %v500 = vmul.f32 %v372, %v468
  %v501 = vmul.f32 %v373, %v469
  %v502 = vmul.f32 %v374, %v470
  %v503 = vmul.f32 %v375, %v471
  %v504 = vmul.f32 %v376, %v472
  %v505 = vmul.f32 %v377, %v473
  %v506 = vmul.f32 %v378, %v474
  %v507 = vmul.f32 %v379, %v475
  %v508 = vmul.f32 %v380, %v476
  %v509 = vmul.f32 %v381, %v477
  %v510 = vmul.f32 %v382, %v478
  %v511 = vmul.f32 %v383, %v479
  %v512 = vmul.f32 %v384, %v480
  %v513 = vmul.f32 %v385, %v481
  %v514 = vmul.f32 %v386, %v482
  %v515 = vmul.f32 %v387, %v483
  %v516 = vmul.f32 %v388, %v484
  %v517 = vmul.f32 %v389, %v485
  %v518 = vmul.f32 %v390, %v486
  %v519 = vmul.f32 %v391, %v487
  %vm520 = vcmask 523264
  %521 = vst.msk [vmem:[%s3] sm:$0xff] %vm520, %v488
  %522 = vst.msk [vmem:[%s3 + $0x8] sm:$0xff] %vm520, %v489
  %523 = vst.msk [vmem:[%s3 + $0x10] sm:$0xff] %vm520, %v490
  %524 = vst.msk [vmem:[%s3 + $0x18] sm:$0xff] %vm520, %v491
  %525 = vst.msk [vmem:[%s3 + $0x20] sm:$0xff] %vm520, %v492
  %526 = vst.msk [vmem:[%s3 + $0x28] sm:$0xff] %vm520, %v493
  %527 = vst.msk [vmem:[%s3 + $0x30] sm:$0xff] %vm520, %v494
  %528 = vst.msk [vmem:[%s3 + $0x38] sm:$0xff] %vm520, %v495
  %529 = vst.msk [vmem:[%s3 + $0x40] sm:$0xff] %vm520, %v496
  %530 = vst.msk [vmem:[%s3 + $0x48] sm:$0xff] %vm520, %v497
  %531 = vst.msk [vmem:[%s3 + $0x50] sm:$0xff] %vm520, %v498
  %532 = vst.msk [vmem:[%s3 + $0x58] sm:$0xff] %vm520, %v499
  %533 = vst.msk [vmem:[%s3 + $0x60] sm:$0xff] %vm520, %v500
  %534 = vst.msk [vmem:[%s3 + $0x68] sm:$0xff] %vm520, %v501
  %535 = vst.msk [vmem:[%s3 + $0x70] sm:$0xff] %vm520, %v502
  %536 = vst.msk [vmem:[%s3 + $0x78] sm:$0xff] %vm520, %v503
  %537 = vst.msk [vmem:[%s3 + $0x80] sm:$0xff] %vm520, %v504
  %538 = vst.msk [vmem:[%s3 + $0x88] sm:$0xff] %vm520, %v505
  %539 = vst.msk [vmem:[%s3 + $0x90] sm:$0xff] %vm520, %v506
  %540 = vst.msk [vmem:[%s3 + $0x98] sm:$0xff] %vm520, %v507
  %541 = vst.msk [vmem:[%s3 + $0xa0] sm:$0xff] %vm520, %v508
  %542 = vst.msk [vmem:[%s3 + $0xa8] sm:$0xff] %vm520, %v509
  %543 = vst.msk [vmem:[%s3 + $0xb0] sm:$0xff] %vm520, %v510
  %544 = vst.msk [vmem:[%s3 + $0xb8] sm:$0xff] %vm520, %v511
  %545 = vst.msk [vmem:[%s3 + $0xc0] sm:$0xff] %vm520, %v512
  %546 = vst.msk [vmem:[%s3 + $0xc8] sm:$0xff] %vm520, %v513
  %547 = vst.msk [vmem:[%s3 + $0xd0] sm:$0xff] %vm520, %v514
  %548 = vst.msk [vmem:[%s3 + $0xd8] sm:$0xff] %vm520, %v515
  %549 = vst.msk [vmem:[%s3 + $0xe0] sm:$0xff] %vm520, %v516
  %550 = vst.msk [vmem:[%s3 + $0xe8] sm:$0xff] %vm520, %v517
  %551 = vst.msk [vmem:[%s3 + $0xf0] sm:$0xff] %vm520, %v518
  %552 = vst.msk [vmem:[%s3 + $0xf8] sm:$0xff] %vm520, %v519
  // Predicated region
  $region14: #{tpu_custom_call.1} parent=0 // pred_check
    _
  $region15: #{tpu_custom_call.1} parent=0 // pred_check_branch
    %554 = sbr.rel (0) target = $region17
  $region16: #{tpu_custom_call.1} parent=0 // pred_region
    _
  $region17: #{tpu_custom_call.1} parent=0 // pred_fallthru
    _
  // Predicated region
  $region18: #{tpu_custom_call.1} parent=0 // pred_check
    _
  $region19: #{tpu_custom_call.1} parent=0 // pred_check_branch
    %556 = sbr.rel (0) target = $region21
  $region20: #{tpu_custom_call.1} parent=0 // pred_region
    _
  $region21: #{tpu_custom_call.1} parent=0 // pred_fallthru
    _

</llo_original>
